<compile_context>
chip_gen: v7x
topology: tpu7x:2x2x1
jax: 0.10.0
libtpu: 0.0.40
codegen_flags: <defaults>
</compile_context>

<pallas_src>
import functools

import jax
import jax.numpy as jnp
from jax.experimental import pallas as pl
from jax.experimental.pallas import tpu as pltpu


def _round_up(n, m=128):
    return ((n + m - 1) // m) * m


def _encoder1_kernel(x_ref, w1_ref, w2_ref, wh_ref, bias_ref, eps_ref, out_ref,
                     *, neurons, features, off_b2, off_bh, out_w):
    F = features
    B = x_ref.shape[0]

    # enc1 + ReLU: bf16 MXU inputs, f32 accumulate.
    h = jnp.dot(x_ref[...].astype(jnp.bfloat16), w1_ref[...],
                preferred_element_type=jnp.float32)
    h = jnp.maximum(h + bias_ref[:, 0:neurons], 0.0)

    # enc2 (f32)
    z = (jnp.dot(h, w2_ref[...], preferred_element_type=jnp.float32)
         + bias_ref[:, off_b2:off_b2 + F])

    # fused mu/logvar head: one matmul producing [mu | logvar] of shape (B, 2F)
    head = (jnp.dot(z, wh_ref[...], preferred_element_type=jnp.float32)
            + bias_ref[:, off_bh:off_bh + 2 * F])

    mu = head[:, :F]
    lv = head[:, F:]
    # reparameterize: eps (1, F) broadcasts over batch (matches torch.randn(F))
    enc = eps_ref[...] * jnp.exp(0.5 * lv) + mu

    # Single lane-dense output slab: [mu | logvar | encoding | zero-pad]
    pieces = [head, enc]
    pad = out_w - 3 * F
    if pad > 0:
        pieces.append(jnp.zeros((B, pad), jnp.float32))
    out_ref[...] = jnp.concatenate(pieces, axis=-1)


def encoder1_forward(x, kp, eps):
    """x: (B, 784) f32.  kp: packed params (see pack_params).  eps: (1, F) f32.
    Returns (mu, logvar, encoding), each (B, F) f32."""
    B, K = x.shape
    neurons = kp["w1"].shape[1]
    F = kp["w2"].shape[1]

    off_b2 = _round_up(neurons)
    off_bh = off_b2 + _round_up(F)
    out_w = _round_up(3 * F)

    kernel = functools.partial(
        _encoder1_kernel, neurons=neurons, features=F,
        off_b2=off_b2, off_bh=off_bh, out_w=out_w)

    vmem = pl.BlockSpec(memory_space=pltpu.MemorySpace.VMEM)

    cost = pl.CostEstimate(
        flops=2 * B * (K * neurons + neurons * F + F * 2 * F),
        transcendentals=B * F,
        bytes_accessed=int(x.nbytes + kp["w1"].nbytes + kp["w2"].nbytes
                           + kp["whead"].nbytes + kp["biases"].nbytes
                           + eps.nbytes + B * out_w * 4),
    )

    out = pl.pallas_call(
        kernel,
        out_shape=jax.ShapeDtypeStruct((B, out_w), jnp.float32),
        in_specs=[vmem] * 6,
        out_specs=vmem,
        cost_estimate=cost,
    )(x, kp["w1"], kp["w2"], kp["whead"], kp["biases"], eps)

    mu = out[:, :F]
    logvar = out[:, F:2 * F]
    encoding = out[:, 2 * F:3 * F]
    return mu, logvar, encoding


def init_params(key, neurons, features):
    """Deterministic init mimicking nn.Linear's U(-1/sqrt(fan_in), 1/sqrt(fan_in)).
    Weights are stored as (in, out) (transposed relative to PyTorch)."""
    def linear(key, fan_in, fan_out):
        kw, kb = jax.random.split(key)
        bound = 1.0 / jnp.sqrt(fan_in)
        w = jax.random.uniform(kw, (fan_in, fan_out), jnp.float32, -bound, bound)
        b = jax.random.uniform(kb, (1, fan_out), jnp.float32, -bound, bound)
        return w, b

    k1, k2, k3, k4 = jax.random.split(key, 4)
    w1, b1 = linear(k1, 784, neurons)
    w2, b2 = linear(k2, neurons, features)
    wmu, bmu = linear(k3, features, features)
    wlv, blv = linear(k4, features, features)
    return dict(w1=w1, b1=b1, w2=w2, b2=b2, wmu=wmu, bmu=bmu, wlv=wlv, blv=blv)


def pack_params(p, *, neurons, features):
    """One-time repack into kernel-ready operands:
       - whead = [wmu | wlv] (F, 2F), fused head weight
       - biases: single lane-aligned (1, total) f32 array holding b1, b2, [bmu|blv]
       - w1 cast to bf16 (halves the largest operand's DMA bytes; MXU accumulates f32)
    """
    F = features
    whead = jnp.concatenate([p["wmu"], p["wlv"]], axis=1)      # (F, 2F)
    bhead = jnp.concatenate([p["bmu"], p["blv"]], axis=1)      # (1, 2F)

    off_b2 = _round_up(neurons)
    off_bh = off_b2 + _round_up(F)
    total = off_bh + _round_up(2 * F)

    biases = jnp.zeros((1, total), jnp.float32)
    biases = biases.at[:, 0:neurons].set(p["b1"])
    biases = biases.at[:, off_b2:off_b2 + F].set(p["b2"])
    biases = biases.at[:, off_bh:off_bh + 2 * F].set(bhead)

    return dict(
        w1=p["w1"].astype(jnp.bfloat16),
        w2=p["w2"],
        whead=whead,
        biases=biases,
    )


if __name__ == "__main__":
    # Small shapes consistent with the module: flattened 784-dim MNIST-like input.
    batch, neurons, features = 8, 32, 16

    key = jax.random.PRNGKey(0)
    kx, kparam, ke = jax.random.split(key, 3)

    x = jax.random.normal(kx, (batch, 784), dtype=jnp.float32)
    raw = init_params(kparam, neurons, features)
    packed = pack_params(raw, neurons=neurons, features=features)
    eps = jax.random.normal(ke, (1, features), dtype=jnp.float32)  # torch.randn(features)

    fwd = jax.jit(encoder1_forward)
    mu, logvar, encoding = fwd(x, packed, eps)
    jax.block_until_ready((mu, logvar, encoding))

    # Sanity check against a pure-JAX reference (same bf16 enc1 weights as the kernel).
    h_ref = jnp.maximum(
        jnp.dot(x.astype(jnp.bfloat16), packed["w1"],
                preferred_element_type=jnp.float32) + raw["b1"], 0.0)
    z_ref = h_ref @ raw["w2"] + raw["b2"]
    mu_ref = z_ref @ raw["wmu"] + raw["bmu"]
    lv_ref = z_ref @ raw["wlv"] + raw["blv"]
    enc_ref = eps * jnp.exp(0.5 * lv_ref) + mu_ref

    assert jnp.allclose(mu, mu_ref, atol=1e-3, rtol=1e-3)
    assert jnp.allclose(logvar, lv_ref, atol=1e-3, rtol=1e-3)
    assert jnp.allclose(encoding, enc_ref, atol=1e-3, rtol=1e-3)

    print("KERNEL_OK")
</pallas_src>

<mosaic_0001>
module attributes {stable_mosaic.version = 11 : i64} {
  func.func @_encoder1_kernel(%arg0: memref<8x784xf32, #tpu.memory_space<vmem>>, %arg1: memref<784x32xbf16, #tpu.memory_space<vmem>>, %arg2: memref<32x16xf32, #tpu.memory_space<vmem>>, %arg3: memref<16x32xf32, #tpu.memory_space<vmem>>, %arg4: memref<1x384xf32, #tpu.memory_space<vmem>>, %arg5: memref<1x16xf32, #tpu.memory_space<vmem>>, %arg6: memref<8x128xf32, #tpu.memory_space<vmem>>) attributes {dimension_semantics = [], scalar_prefetch = 0 : i64, scratch_operands = 0 : i64, tpu.core_type = #tpu.core_type<tc>} {
    %c0 = arith.constant 0 : index
    %c0_0 = arith.constant 0 : index
    %0 = vector.load %arg0[%c0, %c0_0] : memref<8x784xf32, #tpu.memory_space<vmem>>, vector<8x784xf32>
    %1 = arith.truncf %0 : vector<8x784xf32> to vector<8x784xbf16>
    %c0_1 = arith.constant 0 : index
    %c0_2 = arith.constant 0 : index
    %2 = vector.load %arg1[%c0_1, %c0_2] : memref<784x32xbf16, #tpu.memory_space<vmem>>, vector<784x32xbf16>
    %cst = arith.constant dense<0.000000e+00> : vector<8x32xf32>
    %3 = tpu.matmul %1, %2, %cst {dimension_numbers = #tpu.dot_dimension_numbers<[1], [0], [0], [1], [0, 0, 1, 1], [], []>} : vector<8x784xbf16>, vector<784x32xbf16>, vector<8x32xf32> -> vector<8x32xf32>
    %c0_3 = arith.constant 0 : index
    %c0_4 = arith.constant 0 : index
    %4 = vector.load %arg4[%c0_3, %c0_4] : memref<1x384xf32, #tpu.memory_space<vmem>>, vector<1x32xf32>
    %5 = vector.broadcast %4 : vector<1x32xf32> to vector<8x32xf32>
    %6 = arith.addf %3, %5 : vector<8x32xf32>
    %cst_5 = arith.constant 0.000000e+00 : f32
    %7 = vector.broadcast %cst_5 : f32 to vector<8x32xf32>
    %8 = arith.maximumf %6, %7 : vector<8x32xf32>
    %c0_6 = arith.constant 0 : index
    %c0_7 = arith.constant 0 : index
    %9 = vector.load %arg2[%c0_6, %c0_7] : memref<32x16xf32, #tpu.memory_space<vmem>>, vector<32x16xf32>
    %cst_8 = arith.constant dense<0.000000e+00> : vector<8x16xf32>
    %10 = tpu.matmul %8, %9, %cst_8 {dimension_numbers = #tpu.dot_dimension_numbers<[1], [0], [0], [1], [0, 0, 1, 1], [], []>} : vector<8x32xf32>, vector<32x16xf32>, vector<8x16xf32> -> vector<8x16xf32>
    %c0_9 = arith.constant 0 : index
    %c128 = arith.constant 128 : index
    %11 = vector.load %arg4[%c0_9, %c128] : memref<1x384xf32, #tpu.memory_space<vmem>>, vector<1x16xf32>
    %12 = vector.broadcast %11 : vector<1x16xf32> to vector<8x16xf32>
    %13 = arith.addf %10, %12 : vector<8x16xf32>
    %c0_10 = arith.constant 0 : index
    %c0_11 = arith.constant 0 : index
    %14 = vector.load %arg3[%c0_10, %c0_11] : memref<16x32xf32, #tpu.memory_space<vmem>>, vector<16x32xf32>
    %cst_12 = arith.constant dense<0.000000e+00> : vector<8x32xf32>
    %15 = tpu.matmul %13, %14, %cst_12 {dimension_numbers = #tpu.dot_dimension_numbers<[1], [0], [0], [1], [0, 0, 1, 1], [], []>} : vector<8x16xf32>, vector<16x32xf32>, vector<8x32xf32> -> vector<8x32xf32>
    %c0_13 = arith.constant 0 : index
    %c256 = arith.constant 256 : index
    %16 = vector.load %arg4[%c0_13, %c256] : memref<1x384xf32, #tpu.memory_space<vmem>>, vector<1x32xf32>
    %17 = vector.broadcast %16 : vector<1x32xf32> to vector<8x32xf32>
    %18 = arith.addf %15, %17 : vector<8x32xf32>
    %19 = vector.extract_strided_slice %18 {offsets = [0, 0], sizes = [8, 16], strides = [1, 1]} : vector<8x32xf32> to vector<8x16xf32>
    %20 = vector.extract_strided_slice %18 {offsets = [0, 16], sizes = [8, 16], strides = [1, 1]} : vector<8x32xf32> to vector<8x16xf32>
    %c0_14 = arith.constant 0 : index
    %c0_15 = arith.constant 0 : index
    %21 = vector.load %arg5[%c0_14, %c0_15] : memref<1x16xf32, #tpu.memory_space<vmem>>, vector<1x16xf32>
    %cst_16 = arith.constant 5.000000e-01 : f32
    %22 = vector.broadcast %cst_16 : f32 to vector<8x16xf32>
    %23 = arith.mulf %22, %20 : vector<8x16xf32>
    %24 = math.exp %23 : vector<8x16xf32>
    %25 = vector.broadcast %21 : vector<1x16xf32> to vector<8x16xf32>
    %26 = arith.mulf %25, %24 : vector<8x16xf32>
    %27 = arith.addf %26, %19 : vector<8x16xf32>
    %cst_17 = arith.constant 0.000000e+00 : f32
    %28 = vector.broadcast %cst_17 : f32 to vector<8x80xf32>
    %29 = tpu.concatenate %18, %27, %28 in 1 : vector<8x32xf32>, vector<8x16xf32>, vector<8x80xf32> -> vector<8x128xf32>
    %c0_18 = arith.constant 0 : index
    %c0_19 = arith.constant 0 : index
    %30 = vector.load %arg6[%c0_18, %c0_19] : memref<8x128xf32, #tpu.memory_space<vmem>>, vector<8x128xf32>
    tpu.vector_store %arg6[%c0_18, %c0_19], %29 {strides = array<i32>} : memref<8x128xf32, #tpu.memory_space<vmem>>, vector<8x128xf32>,
    return
  }
}

</mosaic_0001>

<llo_original>
// kernel: encoder1_forward.1
$region0: #{encoder1_forward.1}
  #allocation0 [shape = 'u32[]', space=smem, size = 0x4, offset = 0x4, fixed_abs, tag = 'smem constant byte address 0x4 - core index']
  #allocation1 [shape = 'u32[144,128]{1,0:T(1,128)}', space=vmem, size = 0x12000, scoped, tag = 'internal scratch']
  %s0 = inlined_call_operand.vmem [shape: f32[8,784], index: 0, kind: input, shape index: {}]
  %s1 = inlined_call_operand.vmem [shape: bf16[784,32], index: 1, kind: input, shape index: {}]
  %s2 = inlined_call_operand.vmem [shape: f32[32,16], index: 2, kind: input, shape index: {}]
  %s3 = inlined_call_operand.vmem [shape: f32[16,32], index: 3, kind: input, shape index: {}]
  %s4 = inlined_call_operand.vmem [shape: f32[1,384], index: 4, kind: input, shape index: {}]
  %s5 = inlined_call_operand.vmem [shape: f32[1,16], index: 5, kind: input, shape index: {}]
  %s6 = inlined_call_operand.vmem [shape: f32[8,128], index: 6, kind: output, shape index: {}]
  %s7 = sld [smem:[#allocation0]]
  $region34: #{encoder1_forward.1} parent=0
    _
  %s9 = ssub.s32 1, %s7
  %s10 = scalar_select 0, %s9, %s7
  // Predicated region
  $region2: #{encoder1_forward.1} parent=0 // pred_check
    _
  $region3: #{encoder1_forward.1} parent=0 // pred_check_branch
    %12 = sbr.rel (0) target = $region5
  $region4: #{encoder1_forward.1} parent=0 // pred_region
    _
  $region5: #{encoder1_forward.1} parent=0 // pred_fallthru
    _
  // Predicated region
  $region6: #{encoder1_forward.1} parent=0 // pred_check
    _
  $region7: #{encoder1_forward.1} parent=0 // pred_check_branch
    %14 = sbr.rel (0) target = $region9
  $region8: #{encoder1_forward.1} parent=0 // pred_region
    _
  $region9: #{encoder1_forward.1} parent=0 // pred_fallthru
    _
  // Predicated region
  $region10: #{encoder1_forward.1} parent=0 // pred_check
    _
  $region11: #{encoder1_forward.1} parent=0 // pred_check_branch
    %16 = sbr.rel (0) target = $region13
  $region12: #{encoder1_forward.1} parent=0 // pred_region
    _
  $region13: #{encoder1_forward.1} parent=0 // pred_fallthru
    _
  // Predicated region
  $region14: #{encoder1_forward.1} parent=0 // pred_check
    _
  $region15: #{encoder1_forward.1} parent=0 // pred_check_branch
    %18 = sbr.rel (0) target = $region17
  $region16: #{encoder1_forward.1} parent=0 // pred_region
    _
  $region17: #{encoder1_forward.1} parent=0 // pred_fallthru
    _
  // Predicated region
  $region18: #{encoder1_forward.1} parent=0 // pred_check
    _
  $region19: #{encoder1_forward.1} parent=0 // pred_check_branch
    %20 = sbr.rel (0) target = $region21
  $region20: #{encoder1_forward.1} parent=0 // pred_region
    _
  $region21: #{encoder1_forward.1} parent=0 // pred_fallthru
    _
  // Predicated region
  $region22: #{encoder1_forward.1} parent=0 // pred_check
    _
  $region23: #{encoder1_forward.1} parent=0 // pred_check_branch
    %22 = sbr.rel (0) target = $region25
  $region24: #{encoder1_forward.1} parent=0 // pred_region
    _
  $region25: #{encoder1_forward.1} parent=0 // pred_fallthru
    _
  %v24 = vld [vmem:[%s0] sm:$0xff]
  %v25 = vld [vmem:[%s0 + $0x8] sm:$0xff]
  %v26 = vld [vmem:[%s0 + $0x10] sm:$0xff]
  %v27 = vld [vmem:[%s0 + $0x18] sm:$0xff]
  %v28 = vld [vmem:[%s0 + $0x20] sm:$0xff]
  %v29 = vld [vmem:[%s0 + $0x28] sm:$0xff]
  %v30 = vld [vmem:[%s0 + $0x30] sm:$0xff]
  %v31 = vpack.c.bf16 %v24, %v24
  %v32 = vpack.c.bf16 %v25, %v25
  %v33 = vpack.c.bf16 %v26, %v26
  %v34 = vpack.c.bf16 %v27, %v27
  %v35 = vpack.c.bf16 %v28, %v28
  %v36 = vpack.c.bf16 %v29, %v29
  %v37 = vpack.c.bf16 %v30, %v30
  %v38 = vld [vmem:[%s1] sm:$0xf]
  %v39 = vld [vmem:[%s1 + $0x4] sm:$0xf]
  %v40 = vld [vmem:[%s1 + $0x8] sm:$0xf]
  %v41 = vld [vmem:[%s1 + $0xc] sm:$0xf]
  %v42 = vld [vmem:[%s1 + $0x10] sm:$0xf]
  %v43 = vld [vmem:[%s1 + $0x14] sm:$0xf]
  %v44 = vld [vmem:[%s1 + $0x18] sm:$0xf]
  %v45 = vld [vmem:[%s1 + $0x1c] sm:$0xf]
  %v46 = vld [vmem:[%s1 + $0x20] sm:$0xf]
  %v47 = vld [vmem:[%s1 + $0x24] sm:$0xf]
  %v48 = vld [vmem:[%s1 + $0x28] sm:$0xf]
  %v49 = vld [vmem:[%s1 + $0x2c] sm:$0xf]
  %v50 = vld [vmem:[%s1 + $0x30] sm:$0xf]
  %v51 = vld [vmem:[%s1 + $0x34] sm:$0xf]
  %v52 = vld [vmem:[%s1 + $0x38] sm:$0xf]
  %v53 = vld [vmem:[%s1 + $0x3c] sm:$0xf]
  %v54 = vld [vmem:[%s1 + $0x40] sm:$0xf]
  %v55 = vld [vmem:[%s1 + $0x44] sm:$0xf]
  %v56 = vld [vmem:[%s1 + $0x48] sm:$0xf]
  %v57 = vld [vmem:[%s1 + $0x4c] sm:$0xf]
  %v58 = vld [vmem:[%s1 + $0x50] sm:$0xf]
  %v59 = vld [vmem:[%s1 + $0x54] sm:$0xf]
  %v60 = vld [vmem:[%s1 + $0x58] sm:$0xf]
  %v61 = vld [vmem:[%s1 + $0x5c] sm:$0xf]
  %v62 = vld [vmem:[%s1 + $0x60] sm:$0xf]
  %v63 = vld [vmem:[%s1 + $0x64] sm:$0xf]
  %v64 = vld [vmem:[%s1 + $0x68] sm:$0xf]
  %v65 = vld [vmem:[%s1 + $0x6c] sm:$0xf]
  %v66 = vld [vmem:[%s1 + $0x70] sm:$0xf]
  %v67 = vld [vmem:[%s1 + $0x74] sm:$0xf]
  %v68 = vld [vmem:[%s1 + $0x78] sm:$0xf]
  %v69 = vld [vmem:[%s1 + $0x7c] sm:$0xf]
  %v70 = vld [vmem:[%s1 + $0x80] sm:$0xf]
  %v71 = vld [vmem:[%s1 + $0x84] sm:$0xf]
  %v72 = vld [vmem:[%s1 + $0x88] sm:$0xf]
  %v73 = vld [vmem:[%s1 + $0x8c] sm:$0xf]
  %v74 = vld [vmem:[%s1 + $0x90] sm:$0xf]
  %v75 = vld [vmem:[%s1 + $0x94] sm:$0xf]
  %v76 = vld [vmem:[%s1 + $0x98] sm:$0xf]
  %v77 = vld [vmem:[%s1 + $0x9c] sm:$0xf]
  %v78 = vld [vmem:[%s1 + $0xa0] sm:$0xf]
  %v79 = vld [vmem:[%s1 + $0xa4] sm:$0xf]
  %v80 = vld [vmem:[%s1 + $0xa8] sm:$0xf]
  %v81 = vld [vmem:[%s1 + $0xac] sm:$0xf]
  %v82 = vld [vmem:[%s1 + $0xb0] sm:$0xf]
  %v83 = vld [vmem:[%s1 + $0xb4] sm:$0xf]
  %v84 = vld [vmem:[%s1 + $0xb8] sm:$0xf]
  %v85 = vld [vmem:[%s1 + $0xbc] sm:$0xf]
  %v86 = vld [vmem:[%s1 + $0xc0] sm:$0xf]
  %v87 = vld [vmem:[%s1 + $0xc4] sm:$0xf]
  %v88 = vld [vmem:[%s1 + $0xc8] sm:$0xf]
  %v89 = vld [vmem:[%s1 + $0xcc] sm:$0xf]
  %v90 = vld [vmem:[%s1 + $0xd0] sm:$0xf]
  %v91 = vld [vmem:[%s1 + $0xd4] sm:$0xf]
  %v92 = vld [vmem:[%s1 + $0xd8] sm:$0xf]
  %v93 = vld [vmem:[%s1 + $0xdc] sm:$0xf]
  %v94 = vld [vmem:[%s1 + $0xe0] sm:$0xf]
  %v95 = vld [vmem:[%s1 + $0xe4] sm:$0xf]
  %v96 = vld [vmem:[%s1 + $0xe8] sm:$0xf]
  %v97 = vld [vmem:[%s1 + $0xec] sm:$0xf]
  %v98 = vld [vmem:[%s1 + $0xf0] sm:$0xf]
  %v99 = vld [vmem:[%s1 + $0xf4] sm:$0xf]
  %v100 = vld [vmem:[%s1 + $0xf8] sm:$0xf]
  %v101 = vld [vmem:[%s1 + $0xfc] sm:$0xf]
  %v102 = vld [vmem:[%s1 + $0x100] sm:$0xf]
  %v103 = vld [vmem:[%s1 + $0x104] sm:$0xf]
  %v104 = vld [vmem:[%s1 + $0x108] sm:$0xf]
  %v105 = vld [vmem:[%s1 + $0x10c] sm:$0xf]
  %v106 = vld [vmem:[%s1 + $0x110] sm:$0xf]
  %v107 = vld [vmem:[%s1 + $0x114] sm:$0xf]
  %v108 = vld [vmem:[%s1 + $0x118] sm:$0xf]
  %v109 = vld [vmem:[%s1 + $0x11c] sm:$0xf]
  %v110 = vld [vmem:[%s1 + $0x120] sm:$0xf]
  %v111 = vld [vmem:[%s1 + $0x124] sm:$0xf]
  %v112 = vld [vmem:[%s1 + $0x128] sm:$0xf]
  %v113 = vld [vmem:[%s1 + $0x12c] sm:$0xf]
  %v114 = vld [vmem:[%s1 + $0x130] sm:$0xf]
  %v115 = vld [vmem:[%s1 + $0x134] sm:$0xf]
  %v116 = vld [vmem:[%s1 + $0x138] sm:$0xf]
  %v117 = vld [vmem:[%s1 + $0x13c] sm:$0xf]
  %v118 = vld [vmem:[%s1 + $0x140] sm:$0xf]
  %v119 = vld [vmem:[%s1 + $0x144] sm:$0xf]
  %v120 = vld [vmem:[%s1 + $0x148] sm:$0xf]
  %v121 = vld [vmem:[%s1 + $0x14c] sm:$0xf]
  %v122 = vld [vmem:[%s1 + $0x150] sm:$0xf]
  %v123 = vld [vmem:[%s1 + $0x154] sm:$0xf]
  %v124 = vld [vmem:[%s1 + $0x158] sm:$0xf]
  %v125 = vld [vmem:[%s1 + $0x15c] sm:$0xf]
  %v126 = vld [vmem:[%s1 + $0x160] sm:$0xf]
  %v127 = vld [vmem:[%s1 + $0x164] sm:$0xf]
  %v128 = vld [vmem:[%s1 + $0x168] sm:$0xf]
  %v129 = vld [vmem:[%s1 + $0x16c] sm:$0xf]
  %v130 = vld [vmem:[%s1 + $0x170] sm:$0xf]
  %v131 = vld [vmem:[%s1 + $0x174] sm:$0xf]
  %v132 = vld [vmem:[%s1 + $0x178] sm:$0xf]
  %v133 = vld [vmem:[%s1 + $0x17c] sm:$0xf]
  %v134 = vld [vmem:[%s1 + $0x180] sm:$0xf]
  %v135 = vld [vmem:[%s1 + $0x184] sm:$0xf]
  %v136 = vld [vmem:[%s4] sm:$0x1]
  %v138 = vlaneseq
  %v139 = vshrl.u32 %v138, 7
  %v140 = vsub.s32 0, %v139
  %v141 = vrot.slane %v136, %v140
  %v241 = vunpack.c.l.b16 %v38
  %v242 = vunpack.c.l.b16 %v39
  %v243 = vunpack.c.l.b16 %v40
  %v244 = vunpack.c.l.b16 %v41
  %v245 = vunpack.c.l.b16 %v42
  %v246 = vunpack.c.l.b16 %v43
  %v247 = vunpack.c.l.b16 %v44
  %v248 = vunpack.c.l.b16 %v45
  %v249 = vunpack.c.l.b16 %v46
  %v250 = vunpack.c.l.b16 %v47
  %v251 = vunpack.c.l.b16 %v48
  %v252 = vunpack.c.l.b16 %v49
  %v253 = vunpack.c.l.b16 %v50
  %v254 = vunpack.c.l.b16 %v51
  %v255 = vunpack.c.l.b16 %v52
  %v256 = vunpack.c.l.b16 %v53
  %v257 = vunpack.c.l.b16 %v54
  %v258 = vunpack.c.l.b16 %v55
  %v259 = vunpack.c.l.b16 %v56
  %v260 = vunpack.c.l.b16 %v57
  %v261 = vunpack.c.l.b16 %v58
  %v262 = vunpack.c.l.b16 %v59
  %v263 = vunpack.c.l.b16 %v60
  %v264 = vunpack.c.l.b16 %v61
  %v265 = vunpack.c.l.b16 %v62
  %v266 = vunpack.c.l.b16 %v63
  %v267 = vunpack.c.l.b16 %v64
  %v268 = vunpack.c.l.b16 %v65
  %v269 = vunpack.c.l.b16 %v66
  %v270 = vunpack.c.l.b16 %v67
  %v271 = vunpack.c.l.b16 %v68
  %v272 = vunpack.c.l.b16 %v69
  %v273 = vunpack.c.l.b16 %v70
  %v274 = vunpack.c.l.b16 %v71
  %v275 = vunpack.c.l.b16 %v72
  %v276 = vunpack.c.l.b16 %v73
  %v277 = vunpack.c.l.b16 %v74
  %v278 = vunpack.c.l.b16 %v75
  %v279 = vunpack.c.l.b16 %v76
  %v280 = vunpack.c.l.b16 %v77
  %v281 = vunpack.c.l.b16 %v78
  %v282 = vunpack.c.l.b16 %v79
  %v283 = vunpack.c.l.b16 %v80
  %v284 = vunpack.c.l.b16 %v81
  %v285 = vunpack.c.l.b16 %v82
  %v286 = vunpack.c.l.b16 %v83
  %v287 = vunpack.c.l.b16 %v84
  %v288 = vunpack.c.l.b16 %v85
  %v289 = vunpack.c.l.b16 %v86
  %v290 = vunpack.c.l.b16 %v87
  %v291 = vunpack.c.l.b16 %v88
  %v292 = vunpack.c.l.b16 %v89
  %v293 = vunpack.c.l.b16 %v90
  %v294 = vunpack.c.l.b16 %v91
  %v295 = vunpack.c.l.b16 %v92
  %v296 = vunpack.c.l.b16 %v93
  %v297 = vunpack.c.l.b16 %v94
  %v298 = vunpack.c.l.b16 %v95
  %v299 = vunpack.c.l.b16 %v96
  %v300 = vunpack.c.l.b16 %v97
  %v301 = vunpack.c.l.b16 %v98
  %v302 = vunpack.c.l.b16 %v99
  %v303 = vunpack.c.l.b16 %v100
  %v304 = vunpack.c.l.b16 %v101
  %v305 = vunpack.c.l.b16 %v102
  %v306 = vunpack.c.l.b16 %v103
  %v307 = vunpack.c.l.b16 %v104
  %v308 = vunpack.c.l.b16 %v105
  %v309 = vunpack.c.l.b16 %v106
  %v310 = vunpack.c.l.b16 %v107
  %v311 = vunpack.c.l.b16 %v108
  %v312 = vunpack.c.l.b16 %v109
  %v313 = vunpack.c.l.b16 %v110
  %v314 = vunpack.c.l.b16 %v111
  %v315 = vunpack.c.l.b16 %v112
  %v316 = vunpack.c.l.b16 %v113
  %v317 = vunpack.c.l.b16 %v114
  %v318 = vunpack.c.l.b16 %v115
  %v319 = vunpack.c.l.b16 %v116
  %v320 = vunpack.c.l.b16 %v117
  %v321 = vunpack.c.l.b16 %v118
  %v322 = vunpack.c.l.b16 %v119
  %v323 = vunpack.c.l.b16 %v120
  %v324 = vunpack.c.l.b16 %v121
  %v325 = vunpack.c.l.b16 %v122
  %v326 = vunpack.c.l.b16 %v123
  %v327 = vunpack.c.l.b16 %v124
  %v328 = vunpack.c.l.b16 %v125
  %v329 = vunpack.c.l.b16 %v126
  %v330 = vunpack.c.l.b16 %v127
  %v331 = vunpack.c.l.b16 %v128
  %v332 = vunpack.c.l.b16 %v129
  %v333 = vunpack.c.l.b16 %v130
  %v334 = vunpack.c.l.b16 %v131
  %v335 = vunpack.c.l.b16 %v132
  %v336 = vunpack.c.l.b16 %v133
  %v337 = vunpack.c.l.b16 %v134
  %v338 = vunpack.c.l.b16 %v135
  %v339 = vpack.c.b16 %v242, %v241
  %v340 = vpack.c.b16 %v244, %v243
  %v341 = vpack.c.b16 %v246, %v245
  %v342 = vpack.c.b16 %v248, %v247
  %v343 = vpack.c.b16 %v250, %v249
  %v344 = vpack.c.b16 %v252, %v251
  %v345 = vpack.c.b16 %v254, %v253
  %v346 = vpack.c.b16 %v256, %v255
  %v347 = vpack.c.b16 %v258, %v257
  %v348 = vpack.c.b16 %v260, %v259
  %v349 = vpack.c.b16 %v262, %v261
  %v350 = vpack.c.b16 %v264, %v263
  %v351 = vpack.c.b16 %v266, %v265
  %v352 = vpack.c.b16 %v268, %v267
  %v353 = vpack.c.b16 %v270, %v269
  %v354 = vpack.c.b16 %v272, %v271
  %v355 = vpack.c.b16 %v274, %v273
  %v356 = vpack.c.b16 %v276, %v275
  %v357 = vpack.c.b16 %v278, %v277
  %v358 = vpack.c.b16 %v280, %v279
  %v359 = vpack.c.b16 %v282, %v281
  %v360 = vpack.c.b16 %v284, %v283
  %v361 = vpack.c.b16 %v286, %v285
  %v362 = vpack.c.b16 %v288, %v287
  %v363 = vpack.c.b16 %v290, %v289
  %v364 = vpack.c.b16 %v292, %v291
  %v365 = vpack.c.b16 %v294, %v293
  %v366 = vpack.c.b16 %v296, %v295
  %v367 = vpack.c.b16 %v298, %v297
  %v368 = vpack.c.b16 %v300, %v299
  %v369 = vpack.c.b16 %v302, %v301
  %v370 = vpack.c.b16 %v304, %v303
  %v371 = vpack.c.b16 %v306, %v305
  %v372 = vpack.c.b16 %v308, %v307
  %v373 = vpack.c.b16 %v310, %v309
  %v374 = vpack.c.b16 %v312, %v311
  %v375 = vpack.c.b16 %v314, %v313
  %v376 = vpack.c.b16 %v316, %v315
  %v377 = vpack.c.b16 %v318, %v317
  %v378 = vpack.c.b16 %v320, %v319
  %v379 = vpack.c.b16 %v322, %v321
  %v380 = vpack.c.b16 %v324, %v323
  %v381 = vpack.c.b16 %v326, %v325
  %v382 = vpack.c.b16 %v328, %v327
  %v383 = vpack.c.b16 %v330, %v329
  %v384 = vpack.c.b16 %v332, %v331
  %v385 = vpack.c.b16 %v334, %v333
  %v386 = vpack.c.b16 %v336, %v335
  %v387 = vpack.c.b16 %v338, %v337
  %vm437 = vcmask 130048
  %v439 = vsel %vm437, %v37, 0
  %441 = vmatprep.subr.bf16.mxu0 0
  %442 = vmatpush1.bf16.msra.mxu0 %v339
  %443 = vmatprep.subr.bf16.mxu0 0
  %444 = vmatpush1.bf16.msra.mxu0 %v340
  %445 = vmatprep.subr.bf16.mxu0 0
  %446 = vmatpush1.bf16.msra.mxu0 %v341
  %447 = vmatprep.subr.bf16.mxu0 0
  %448 = vmatpush1.bf16.msra.mxu0 %v342
  %449 = vmatprep.subr.bf16.mxu0 0
  %450 = vmatpush1.bf16.msra.mxu0 %v343
  %451 = vmatprep.subr.bf16.mxu0 0
  %452 = vmatpush1.bf16.msra.mxu0 %v344
  %453 = vmatprep.subr.bf16.mxu0 0
  %454 = vmatpush1.bf16.msra.mxu0 %v345
  %455 = vmatprep.subr.bf16.mxu0 0
  %456 = vmatpush1.bf16.msra.mxu0 %v346
  %457 = vmatprep.subr.bf16.mxu0 0
  %458 = vmatpush1.bf16.msra.mxu0 %v347
  %459 = vmatprep.subr.bf16.mxu0 0
  %460 = vmatpush1.bf16.msra.mxu0 %v348
  %461 = vmatprep.subr.bf16.mxu0 0
  %462 = vmatpush1.bf16.msra.mxu0 %v349
  %463 = vmatprep.subr.bf16.mxu0 0
  %464 = vmatpush1.bf16.msra.mxu0 %v350
  %465 = vmatprep.subr.bf16.mxu0 0
  %466 = vmatpush1.bf16.msra.mxu0 %v351
  %467 = vmatprep.subr.bf16.mxu0 0
  %468 = vmatpush1.bf16.msra.mxu0 %v352
  %469 = vmatprep.subr.bf16.mxu0 0
  %470 = vmatpush1.bf16.msra.mxu0 %v353
  %471 = vmatprep.subr.bf16.mxu0 0
  %472 = vmatpush1.bf16.msra.mxu0 %v354
  %473 = vmatprep.mubr.bf16.mxu0 %v32
  %474 = vmatmul.mubr.bf16.gmra.mrb[0].mxu0 %v31
  %v475 = vpop.f32.mrb[0].mxu0
  %v476 = vadd.f32 %v141, %v475
  %v477 = vpop.f32.mrb[0].mxu0
  %v478 = vpop.f32.mrb[0].mxu0
  %v479 = vpop.f32.mrb[0].mxu0
  %480 = vdwg.mxu0
  %481 = vmatprep.subr.bf16.mxu0 0
  %482 = vmatpush1.bf16.msra.mxu0 %v355
  %483 = vmatprep.subr.bf16.mxu0 0
  %484 = vmatpush1.bf16.msra.mxu0 %v356
  %485 = vmatprep.subr.bf16.mxu0 0
  %486 = vmatpush1.bf16.msra.mxu0 %v357
  %487 = vmatprep.subr.bf16.mxu0 0
  %488 = vmatpush1.bf16.msra.mxu0 %v358
  %489 = vmatprep.subr.bf16.mxu0 0
  %490 = vmatpush1.bf16.msra.mxu0 %v359
  %491 = vmatprep.subr.bf16.mxu0 0
  %492 = vmatpush1.bf16.msra.mxu0 %v360
  %493 = vmatprep.subr.bf16.mxu0 0
  %494 = vmatpush1.bf16.msra.mxu0 %v361
  %495 = vmatprep.subr.bf16.mxu0 0
  %496 = vmatpush1.bf16.msra.mxu0 %v362
  %497 = vmatprep.subr.bf16.mxu0 0
  %498 = vmatpush1.bf16.msra.mxu0 %v363
  %499 = vmatprep.subr.bf16.mxu0 0
  %500 = vmatpush1.bf16.msra.mxu0 %v364
  %501 = vmatprep.subr.bf16.mxu0 0
  %502 = vmatpush1.bf16.msra.mxu0 %v365
  %503 = vmatprep.subr.bf16.mxu0 0
  %504 = vmatpush1.bf16.msra.mxu0 %v366
  %505 = vmatprep.subr.bf16.mxu0 0
  %506 = vmatpush1.bf16.msra.mxu0 %v367
  %507 = vmatprep.subr.bf16.mxu0 0
  %508 = vmatpush1.bf16.msra.mxu0 %v368
  %509 = vmatprep.subr.bf16.mxu0 0
  %510 = vmatpush1.bf16.msra.mxu0 %v369
  %511 = vmatprep.subr.bf16.mxu0 0
  %512 = vmatpush1.bf16.msra.mxu0 %v370
  %513 = vmatprep.mubr.bf16.mxu0 %v34
  %514 = vmatmul.mubr.bf16.gmra.mrb[0].mxu0 %v33
  %v515 = vpop.f32.mrb[0].mxu0
  %v516 = vadd.f32 %v476, %v515
  %v517 = vpop.f32.mrb[0].mxu0
  %v518 = vpop.f32.mrb[0].mxu0
  %v519 = vpop.f32.mrb[0].mxu0
  %520 = vdwg.mxu0
  %521 = vmatprep.subr.bf16.mxu0 0
  %522 = vmatpush1.bf16.msra.mxu0 %v371
  %523 = vmatprep.subr.bf16.mxu0 0
  %524 = vmatpush1.bf16.msra.mxu0 %v372
  %525 = vmatprep.subr.bf16.mxu0 0
  %526 = vmatpush1.bf16.msra.mxu0 %v373
  %527 = vmatprep.subr.bf16.mxu0 0
  %528 = vmatpush1.bf16.msra.mxu0 %v374
  %529 = vmatprep.subr.bf16.mxu0 0
  %530 = vmatpush1.bf16.msra.mxu0 %v375
  %531 = vmatprep.subr.bf16.mxu0 0
  %532 = vmatpush1.bf16.msra.mxu0 %v376
  %533 = vmatprep.subr.bf16.mxu0 0
  %534 = vmatpush1.bf16.msra.mxu0 %v377
  %535 = vmatprep.subr.bf16.mxu0 0
  %536 = vmatpush1.bf16.msra.mxu0 %v378
  %537 = vmatprep.subr.bf16.mxu0 0
  %538 = vmatpush1.bf16.msra.mxu0 %v379
  %539 = vmatprep.subr.bf16.mxu0 0
  %540 = vmatpush1.bf16.msra.mxu0 %v380
  %541 = vmatprep.subr.bf16.mxu0 0
  %542 = vmatpush1.bf16.msra.mxu0 %v381
  %543 = vmatprep.subr.bf16.mxu0 0
  %544 = vmatpush1.bf16.msra.mxu0 %v382
  %545 = vmatprep.subr.bf16.mxu0 0
  %546 = vmatpush1.bf16.msra.mxu0 %v383
  %547 = vmatprep.subr.bf16.mxu0 0
  %548 = vmatpush1.bf16.msra.mxu0 %v384
  %549 = vmatprep.subr.bf16.mxu0 0
  %550 = vmatpush1.bf16.msra.mxu0 %v385
  %551 = vmatprep.subr.bf16.mxu0 0
  %552 = vmatpush1.bf16.msra.mxu0 %v386
  %553 = vmatprep.mubr.bf16.mxu0 %v36
  %554 = vmatmul.mubr.bf16.gmra.mrb[0].mxu0 %v35
  %v555 = vpop.f32.mrb[0].mxu0
  %v556 = vadd.f32 %v516, %v555
  %v557 = vpop.f32.mrb[0].mxu0
  %v558 = vpop.f32.mrb[0].mxu0
  %v559 = vpop.f32.mrb[0].mxu0
  %560 = vdwg.mxu0
  %561 = vmatprep.subr.bf16.mxu0 0
  %562 = vmatpush1.bf16.msra.mxu0 %v387
  %563 = vmatprep.subr.bf16.mxu0 0
  %564 = vmatpush1.bf16.msra.mxu0 0
  %565 = vmatprep.subr.bf16.mxu0 0
  %566 = vmatpush1.bf16.msra.mxu0 0
  %567 = vmatprep.subr.bf16.mxu0 0
  %568 = vmatpush1.bf16.msra.mxu0 0
  %569 = vmatprep.subr.bf16.mxu0 0
  %570 = vmatpush1.bf16.msra.mxu0 0
  %571 = vmatprep.subr.bf16.mxu0 0
  %572 = vmatpush1.bf16.msra.mxu0 0
  %573 = vmatprep.subr.bf16.mxu0 0
  %574 = vmatpush1.bf16.msra.mxu0 0
  %575 = vmatprep.subr.bf16.mxu0 0
  %576 = vmatpush1.bf16.msra.mxu0 0
  %577 = vmatprep.subr.bf16.mxu0 0
  %578 = vmatpush1.bf16.msra.mxu0 0
  %579 = vmatprep.subr.bf16.mxu0 0
  %580 = vmatpush1.bf16.msra.mxu0 0
  %581 = vmatprep.subr.bf16.mxu0 0
  %582 = vmatpush1.bf16.msra.mxu0 0
  %583 = vmatprep.subr.bf16.mxu0 0
  %584 = vmatpush1.bf16.msra.mxu0 0
  %585 = vmatprep.subr.bf16.mxu0 0
  %586 = vmatpush1.bf16.msra.mxu0 0
  %587 = vmatprep.subr.bf16.mxu0 0
  %588 = vmatpush1.bf16.msra.mxu0 0
  %589 = vmatprep.subr.bf16.mxu0 0
  %590 = vmatpush1.bf16.msra.mxu0 0
  %591 = vmatprep.subr.bf16.mxu0 0
  %592 = vmatpush1.bf16.msra.mxu0 0
  %593 = vmatprep.mubr.bf16.mxu0 0
  %594 = vmatmul.mubr.bf16.gmra.mrb[0].mxu0 %v439
  %v595 = vpop.f32.mrb[0].mxu0
  %v596 = vadd.f32 %v556, %v595
  %v597 = vpop.f32.mrb[0].mxu0
  %v598 = vpop.f32.mrb[0].mxu0
  %v599 = vpop.f32.mrb[0].mxu0
  %600 = vdwg.mxu0
  %v601 = vmax.f32 %v596, 0.0
  %v602 = vld [vmem:[%s2] sm:$0xff]
  %v603 = vld [vmem:[%s2 + $0x8] sm:$0xff]
  %v604 = vld [vmem:[%s2 + $0x10] sm:$0xff]
  %v605 = vld [vmem:[%s2 + $0x18] sm:$0xff]
  %v606 = vld [vmem:[%s4 + $0x1] sm:$0x1]
  %v608 = vlaneseq
  %v609 = vshrl.u32 %v608, 7
  %v610 = vsub.s32 0, %v609
  %v611 = vrot.slane %v606, %v610
  %vm613 = vcmask 261120
  %v615 = vsel %vm613, %v601, 0
  %617 = vmatprep.subr.mxu0 0.0
  %618 = vmatpush1.msra.mxu0 %v602
  %619 = vmatprep.subr.mxu0 0.0
  %620 = vmatpush1.msra.mxu0 %v603
  %621 = vmatprep.subr.mxu0 0.0
  %622 = vmatpush1.msra.mxu0 %v604
  %623 = vmatprep.subr.mxu0 0.0
  %624 = vmatpush1.msra.mxu0 %v605
  %625 = vmatprep.subr.mxu0 0.0
  %626 = vmatpush1.msra.mxu0 0.0
  %627 = vmatprep.subr.mxu0 0.0
  %628 = vmatpush1.msra.mxu0 0.0
  %629 = vmatprep.subr.mxu0 0.0
  %630 = vmatpush1.msra.mxu0 0.0
  %631 = vmatprep.subr.mxu0 0.0
  %632 = vmatpush1.msra.mxu0 0.0
  %633 = vmatprep.subr.mxu0 0.0
  %634 = vmatpush1.msra.mxu0 0.0
  %635 = vmatprep.subr.mxu0 0.0
  %636 = vmatpush1.msra.mxu0 0.0
  %637 = vmatprep.subr.mxu0 0.0
  %638 = vmatpush1.msra.mxu0 0.0
  %639 = vmatprep.subr.mxu0 0.0
  %640 = vmatpush1.msra.mxu0 0.0
  %641 = vmatprep.subr.mxu0 0.0
  %642 = vmatpush1.msra.mxu0 0.0
  %643 = vmatprep.subr.mxu0 0.0
  %644 = vmatpush1.msra.mxu0 0.0
  %645 = vmatprep.subr.mxu0 0.0
  %646 = vmatpush1.msra.mxu0 0.0
  %647 = vmatprep.subr.mxu0 0.0
  %648 = vmatpush1.msra.mxu0 0.0
  %649 = vmatprep.subr.mxu0 0.0
  %650 = vmatpush1.msra.mxu0 0.0
  %651 = vmatprep.subr.mxu0 0.0
  %652 = vmatpush1.msra.mxu0 0.0
  %653 = vmatprep.subr.mxu0 0.0
  %654 = vmatpush1.msra.mxu0 0.0
  %655 = vmatprep.subr.mxu0 0.0
  %656 = vmatpush1.msra.mxu0 0.0
  %657 = vmatprep.subr.mxu0 0.0
  %658 = vmatpush1.msra.mxu0 0.0
  %659 = vmatprep.subr.mxu0 0.0
  %660 = vmatpush1.msra.mxu0 0.0
  %661 = vmatprep.subr.mxu0 0.0
  %662 = vmatpush1.msra.mxu0 0.0
  %663 = vmatprep.subr.mxu0 0.0
  %664 = vmatpush1.msra.mxu0 0.0
  %665 = vmatprep.subr.mxu0 0.0
  %666 = vmatpush1.msra.mxu0 0.0
  %667 = vmatprep.subr.mxu0 0.0
  %668 = vmatpush1.msra.mxu0 0.0
  %669 = vmatprep.subr.mxu0 0.0
  %670 = vmatpush1.msra.mxu0 0.0
  %671 = vmatprep.subr.mxu0 0.0
  %672 = vmatpush1.msra.mxu0 0.0
  %673 = vmatprep.subr.mxu0 0.0
  %674 = vmatpush1.msra.mxu0 0.0
  %675 = vmatprep.subr.mxu0 0.0
  %676 = vmatpush1.msra.mxu0 0.0
  %677 = vmatprep.subr.mxu0 0.0
  %678 = vmatpush1.msra.mxu0 0.0
  %679 = vmatprep.subr.mxu0 0.0
  %680 = vmatpush1.msra.mxu0 0.0
  %681 = vmatprep.mubr.f32.mxu0 0.0
  %682 = vmatmul.mubr.f32.gmra.mrb[0].mxu0 %v615
  %v683 = vpop.f32.mrb[0].mxu0
  %v684 = vadd.f32 %v611, %v683
  %v685 = vpop.f32.mrb[0].mxu0
  %686 = vdwg.mxu0
  %v687 = vld [vmem:[%s3] sm:$0xff]
  %v688 = vld [vmem:[%s3 + $0x8] sm:$0xff]
  %v689 = vld [vmem:[%s4 + $0x2] sm:$0x1]
  %v691 = vlaneseq
  %v692 = vshrl.u32 %v691, 7
  %v693 = vsub.s32 0, %v692
  %v694 = vrot.slane %v689, %v693
  %v697 = vsel %vm437, %v684, 0
  %699 = vmatprep.subr.mxu0 0.0
  %700 = vmatpush1.msra.mxu0 %v687
  %701 = vmatprep.subr.mxu0 0.0
  %702 = vmatpush1.msra.mxu0 %v688
  %703 = vmatprep.subr.mxu0 0.0
  %704 = vmatpush1.msra.mxu0 0.0
  %705 = vmatprep.subr.mxu0 0.0
  %706 = vmatpush1.msra.mxu0 0.0
  %707 = vmatprep.subr.mxu0 0.0
  %708 = vmatpush1.msra.mxu0 0.0
  %709 = vmatprep.subr.mxu0 0.0
  %710 = vmatpush1.msra.mxu0 0.0
  %711 = vmatprep.subr.mxu0 0.0
  %712 = vmatpush1.msra.mxu0 0.0
  %713 = vmatprep.subr.mxu0 0.0
  %714 = vmatpush1.msra.mxu0 0.0
  %715 = vmatprep.subr.mxu0 0.0
  %716 = vmatpush1.msra.mxu0 0.0
  %717 = vmatprep.subr.mxu0 0.0
  %718 = vmatpush1.msra.mxu0 0.0
  %719 = vmatprep.subr.mxu0 0.0
  %720 = vmatpush1.msra.mxu0 0.0
  %721 = vmatprep.subr.mxu0 0.0
  %722 = vmatpush1.msra.mxu0 0.0
  %723 = vmatprep.subr.mxu0 0.0
  %724 = vmatpush1.msra.mxu0 0.0
  %725 = vmatprep.subr.mxu0 0.0
  %726 = vmatpush1.msra.mxu0 0.0
  %727 = vmatprep.subr.mxu0 0.0
  %728 = vmatpush1.msra.mxu0 0.0
  %729 = vmatprep.subr.mxu0 0.0
  %730 = vmatpush1.msra.mxu0 0.0
  %731 = vmatprep.subr.mxu0 0.0
  %732 = vmatpush1.msra.mxu0 0.0
  %733 = vmatprep.subr.mxu0 0.0
  %734 = vmatpush1.msra.mxu0 0.0
  %735 = vmatprep.subr.mxu0 0.0
  %736 = vmatpush1.msra.mxu0 0.0
  %737 = vmatprep.subr.mxu0 0.0
  %738 = vmatpush1.msra.mxu0 0.0
  %739 = vmatprep.subr.mxu0 0.0
  %740 = vmatpush1.msra.mxu0 0.0
  %741 = vmatprep.subr.mxu0 0.0
  %742 = vmatpush1.msra.mxu0 0.0
  %743 = vmatprep.subr.mxu0 0.0
  %744 = vmatpush1.msra.mxu0 0.0
  %745 = vmatprep.subr.mxu0 0.0
  %746 = vmatpush1.msra.mxu0 0.0
  %747 = vmatprep.subr.mxu0 0.0
  %748 = vmatpush1.msra.mxu0 0.0
  %749 = vmatprep.subr.mxu0 0.0
  %750 = vmatpush1.msra.mxu0 0.0
  %751 = vmatprep.subr.mxu0 0.0
  %752 = vmatpush1.msra.mxu0 0.0
  %753 = vmatprep.subr.mxu0 0.0
  %754 = vmatpush1.msra.mxu0 0.0
  %755 = vmatprep.subr.mxu0 0.0
  %756 = vmatpush1.msra.mxu0 0.0
  %757 = vmatprep.subr.mxu0 0.0
  %758 = vmatpush1.msra.mxu0 0.0
  %759 = vmatprep.subr.mxu0 0.0
  %760 = vmatpush1.msra.mxu0 0.0
  %761 = vmatprep.subr.mxu0 0.0
  %762 = vmatpush1.msra.mxu0 0.0
  %763 = vmatprep.mubr.f32.mxu0 0.0
  %764 = vmatmul.mubr.f32.gmra.mrb[0].mxu0 %v697
  %v765 = vpop.f32.mrb[0].mxu0
  %v766 = vadd.f32 %v694, %v765
  %v767 = vpop.f32.mrb[0].mxu0
  %768 = vdwg.mxu0
  %v769 = vld [vmem:[%s5] sm:$0x1]
  %v770 = vmul.f32 %v766, 0.5
  %v771 = vmul.f32 %v770, 1.442695
  %v772 = vpow.pop %v771
  %v774 = vlaneseq
  %v775 = vshrl.u32 %v774, 7
  %v776 = vsub.s32 0, %v775
  %v777 = vrot.slane %v769, %v776
  %780 = vrot.lane.b32.xlu0 %v772, 112
  %v781 = vpop.permute.xlu0 %780
  %v783 = vmul.f32 %v777, %v781
  %v784 = vadd.f32 %v783, %v766
  %786 = vrot.lane.b32.xlu0 %v784, 32
  %v787 = vpop.permute.xlu0 %786
  %v789 = vsel %vm613, %v766, %v787
  %vm790 = vcmask 392192
  %v791 = vsel %vm790, %v789, 0.0
  %792 = vst [vmem:[%s6] sm:$0xff] %v791
  // Predicated region
  $region26: #{encoder1_forward.1} parent=0 // pred_check
    _
  $region27: #{encoder1_forward.1} parent=0 // pred_check_branch
    %794 = sbr.rel (0) target = $region29
  $region28: #{encoder1_forward.1} parent=0 // pred_region
    _
  $region29: #{encoder1_forward.1} parent=0 // pred_fallthru
    _
  // Predicated region
  $region30: #{encoder1_forward.1} parent=0 // pred_check
    _
  $region31: #{encoder1_forward.1} parent=0 // pred_check_branch
    %796 = sbr.rel (0) target = $region33
  $region32: #{encoder1_forward.1} parent=0 // pred_region
    _
  $region33: #{encoder1_forward.1} parent=0 // pred_fallthru
    _

</llo_original>
